<compile_context>
chip_gen: v7x
topology: tpu7x:2x2x1
jax: 0.10.0
libtpu: 0.0.40
codegen_flags: <defaults>
</compile_context>

<pallas_src>
import functools

import jax
import jax.numpy as jnp
import numpy as np
from jax.experimental import pallas as pl
from jax.experimental.pallas import tpu as pltpu

L1_COEFF = 0.5
WEIGHT_NORMALIZE_EPS = 1e-8


def _block_diag(blocks: jax.Array) -> jax.Array:
    """(n, r, c) stack of per-instance blocks -> (n*r, n*c) block-diagonal."""
    n, r, c = blocks.shape
    eye = jnp.eye(n, dtype=blocks.dtype)
    # No contraction -> exact; just placement of each block on the diagonal.
    return jnp.einsum('irc,ij->irjc', blocks, eye).reshape(n * r, n * c)


def _ae_kernel(h_ref, w_enc_ref, w_dec_ref, bias_ref, out_ref, *,
               n_in_p, n_hid_p, n_out_p, eps):
    """Gridless single invocation; all instances packed into two dense matmuls.

    h_ref:     (bs, n_in_p)                 instance-packed inputs
    w_enc_ref: (n_in_p, n_hid_p)            block-diagonal encoder
    w_dec_ref: (n_hid_p, n_out_p)           block-diag decoder, zero-padded cols
    bias_ref:  (2, max(n_hid_p, n_out_p))   row0 = packed b_enc, row1 = packed b_dec (padded)
    out_ref:   (bs, n_hid_p + n_out_p)      lanes [0,n_hid_p) = acts,
                                            lanes [n_hid_p,...) = h_p (zero padded)
    """
    h = h_ref[...]                                   # (bs, n_in_p)
    b_enc = bias_ref[0:1, :n_hid_p]                  # (1, n_hid_p)
    b_dec_pad = bias_ref[1:2, :n_out_p]              # (1, n_out_p), zeros past n_in_p
    b_dec = b_dec_pad[:, :n_in_p]                    # (1, n_in_p)

    # Encoder: center, project (one MXU push), bias, ReLU.
    zh = h - b_dec
    pre = jnp.dot(zh, w_enc_ref[...], preferred_element_type=jnp.float32) + b_enc
    acts = jnp.maximum(pre, 0.0)                     # (bs, n_hid_p)

    # Decoder row-normalization over the whole packed slab at once.
    # Off-block / padded lanes are exactly zero, so every row norm equals the
    # original per-instance ||W_dec_row||.  Exact reciprocal (the approx EUP
    # reciprocal previously pushed the result past the tolerance).
    w_dec = w_dec_ref[...]                           # (n_hid_p, n_out_p)
    row_norm = jnp.sqrt(jnp.sum(w_dec * w_dec, axis=-1, keepdims=True))
    w_dec_n = w_dec * pl.reciprocal(row_norm + eps, approx=False)

    # Decode (one MXU push) + b_dec.  Padded output lanes stay exactly zero.
    h_p = jnp.dot(acts, w_dec_n, preferred_element_type=jnp.float32) + b_dec_pad

    # Two unmasked full-lane-tile stores into one packed output slab.
    out_ref[:, :n_hid_p] = acts
    out_ref[:, n_hid_p:] = h_p


def autoencoder_forward(h, W_enc, W_dec, b_enc, b_dec,
                        l1_coeff=L1_COEFF, eps=WEIGHT_NORMALIZE_EPS):
    """h: (bs, inst, ae_inp) float32.  Returns (l1, l2, loss, acts, h_p)."""
    bs, n_inst, n_in = h.shape
    n_hid = W_enc.shape[-1]

    n_in_p = n_inst * n_in                          # packed input width   (32)
    n_hid_p = n_inst * n_hid                        # packed hidden width  (128)
    n_out_p = ((n_in_p + 127) // 128) * 128         # decode width, lane-tile padded (128)
    bias_w = max(n_hid_p, n_out_p)

    # --- operand packing (tiny one-off XLA ops, outside the kernel) --------
    h_packed = h.reshape(bs, n_in_p)                            # free reshape
    w_enc_bd = _block_diag(W_enc)                               # (n_in_p, n_hid_p)
    w_dec_bd = _block_diag(W_dec)                               # (n_hid_p, n_in_p)
    w_dec_bd = jnp.pad(w_dec_bd, ((0, 0), (0, n_out_p - n_in_p)))
    bias = jnp.zeros((2, bias_w), jnp.float32)
    bias = bias.at[0, :n_hid_p].set(b_enc.reshape(n_hid_p))
    bias = bias.at[1, :n_in_p].set(b_dec.reshape(n_in_p))

    kernel = functools.partial(_ae_kernel, n_in_p=n_in_p, n_hid_p=n_hid_p,
                               n_out_p=n_out_p, eps=eps)

    packed = pl.pallas_call(
        kernel,
        out_shape=jax.ShapeDtypeStruct((bs, n_hid_p + n_out_p), jnp.float32),
        # Gridless: full operands resident in VMEM, no per-step pipeline.
        in_specs=[pl.BlockSpec(memory_space=pltpu.MemorySpace.VMEM)] * 4,
        out_specs=pl.BlockSpec(memory_space=pltpu.MemorySpace.VMEM),
    )(h_packed, w_enc_bd, w_dec_bd, bias)

    # Unpack (slices + reshapes only) and do the cheap reductions in XLA.
    acts = packed[:, :n_hid_p].reshape(bs, n_inst, n_hid)
    h_p = packed[:, n_hid_p:n_hid_p + n_in_p].reshape(bs, n_inst, n_in)
    l1 = jnp.sum(acts, axis=-1)                     # (bs, inst)
    l2 = jnp.mean((h - h_p) ** 2, axis=-1)          # (bs, inst)
    loss = jnp.mean(jnp.sum(l1 * l1_coeff + l2, axis=1))
    return l1, l2, loss, acts, h_p


def _reference_forward_np(h, W_enc, W_dec, b_enc, b_dec,
                          l1_coeff=L1_COEFF, eps=WEIGHT_NORMALIZE_EPS):
    """Float64 NumPy ground truth (no TPU matmul-precision ambiguity)."""
    h = np.asarray(h, np.float64)
    W_enc = np.asarray(W_enc, np.float64)
    W_dec = np.asarray(W_dec, np.float64)
    b_enc = np.asarray(b_enc, np.float64)
    b_dec = np.asarray(b_dec, np.float64)
    zh = h - b_dec[None]
    pre = np.einsum('iah,bia->bih', W_enc, zh) + b_enc[None]
    acts = np.maximum(pre, 0.0)
    w_dec_n = W_dec / (np.linalg.norm(W_dec, axis=-1, keepdims=True) + eps)
    h_p = np.einsum('iha,bih->bia', w_dec_n, acts) + b_dec[None]
    l1 = acts.sum(axis=-1)
    l2 = ((h - h_p) ** 2).mean(axis=-1)
    loss = (l1 * l1_coeff + l2).sum(axis=1).mean()
    return l1, l2, loss, acts, h_p


if __name__ == "__main__":
    # Config consistent with AutoEncoderConfig: n_instances=2, n_input_ae=16,
    # n_hidden_ae=64, batch=8.  Packed acts slab is exactly (8, 128).
    bs, n_inst, n_in, n_hid = 8, 2, 16, 64

    key = jax.random.PRNGKey(0)
    k_h, k_we, k_wd, k_be, k_bd = jax.random.split(key, 5)

    # xavier_normal_-style weights; small nonzero biases to exercise b_enc/b_dec paths.
    std_enc = float(np.sqrt(2.0 / (n_in + n_hid)))
    std_dec = float(np.sqrt(2.0 / (n_hid + n_in)))
    W_enc = std_enc * jax.random.normal(k_we, (n_inst, n_in, n_hid), jnp.float32)
    W_dec = std_dec * jax.random.normal(k_wd, (n_inst, n_hid, n_in), jnp.float32)
    b_enc = 0.1 * jax.random.normal(k_be, (n_inst, n_hid), jnp.float32)
    b_dec = 0.1 * jax.random.normal(k_bd, (n_inst, n_in), jnp.float32)

    h = jax.random.normal(k_h, (bs, n_inst, n_in), jnp.float32)

    outs = jax.jit(autoencoder_forward)(h, W_enc, W_dec, b_enc, b_dec)
    jax.block_until_ready(outs)

    # Correctness check against an exact float64 reference.  Tolerance covers
    # the MXU's bf16-pass decomposition of the two f32 matmuls inside the
    # kernel; everything else (normalization, bias, ReLU, reductions) is exact.
    ref = _reference_forward_np(h, W_enc, W_dec, b_enc, b_dec)
    for got, want in zip(outs, ref):
        np.testing.assert_allclose(np.asarray(got, np.float64), want,
                                   rtol=1e-2, atol=1e-2)

    print("KERNEL_OK")
</pallas_src>

<mosaic_0001>
module attributes {stable_mosaic.version = 11 : i64} {
  func.func @_ae_kernel(%arg0: memref<8x32xf32, #tpu.memory_space<vmem>>, %arg1: memref<32x128xf32, #tpu.memory_space<vmem>>, %arg2: memref<128x128xf32, #tpu.memory_space<vmem>>, %arg3: memref<2x128xf32, #tpu.memory_space<vmem>>, %arg4: memref<8x256xf32, #tpu.memory_space<vmem>>) attributes {dimension_semantics = [], scalar_prefetch = 0 : i64, scratch_operands = 0 : i64, tpu.core_type = #tpu.core_type<tc>} {
    %c0 = arith.constant 0 : index
    %c0_0 = arith.constant 0 : index
    %0 = vector.load %arg0[%c0, %c0_0] : memref<8x32xf32, #tpu.memory_space<vmem>>, vector<8x32xf32>
    %c0_1 = arith.constant 0 : index
    %c0_2 = arith.constant 0 : index
    %1 = vector.load %arg3[%c0_1, %c0_2] : memref<2x128xf32, #tpu.memory_space<vmem>>, vector<1x128xf32>
    %c1 = arith.constant 1 : index
    %c0_3 = arith.constant 0 : index
    %2 = vector.load %arg3[%c1, %c0_3] : memref<2x128xf32, #tpu.memory_space<vmem>>, vector<1x128xf32>
    %3 = vector.extract_strided_slice %2 {offsets = [0, 0], sizes = [1, 32], strides = [1, 1]} : vector<1x128xf32> to vector<1x32xf32>
    %4 = vector.broadcast %3 : vector<1x32xf32> to vector<8x32xf32>
    %5 = arith.subf %0, %4 : vector<8x32xf32>
    %c0_4 = arith.constant 0 : index
    %c0_5 = arith.constant 0 : index
    %6 = vector.load %arg1[%c0_4, %c0_5] : memref<32x128xf32, #tpu.memory_space<vmem>>, vector<32x128xf32>
    %cst = arith.constant dense<0.000000e+00> : vector<8x128xf32>
    %7 = tpu.matmul %5, %6, %cst {dimension_numbers = #tpu.dot_dimension_numbers<[1], [0], [0], [1], [0, 0, 1, 1], [], []>} : vector<8x32xf32>, vector<32x128xf32>, vector<8x128xf32> -> vector<8x128xf32>
    %8 = vector.broadcast %1 : vector<1x128xf32> to vector<8x128xf32>
    %9 = arith.addf %7, %8 : vector<8x128xf32>
    %cst_6 = arith.constant 0.000000e+00 : f32
    %10 = vector.broadcast %cst_6 : f32 to vector<8x128xf32>
    %11 = arith.maximumf %9, %10 : vector<8x128xf32>
    %c0_7 = arith.constant 0 : index
    %c0_8 = arith.constant 0 : index
    %12 = vector.load %arg2[%c0_7, %c0_8] : memref<128x128xf32, #tpu.memory_space<vmem>>, vector<128x128xf32>
    %13 = arith.mulf %12, %12 : vector<128x128xf32>
    %cst_9 = arith.constant dense<0.000000e+00> : vector<128xf32>
    %14 = vector.multi_reduction <add>, %13, %cst_9 [1] : vector<128x128xf32> to vector<128xf32>
    %15 = vector.shape_cast %14 : vector<128xf32> to vector<128x1xf32>
    %16 = math.sqrt %15 : vector<128x1xf32>
    %cst_10 = arith.constant 9.99999993E-9 : f32
    %17 = vector.broadcast %cst_10 : f32 to vector<128x1xf32>
    %18 = arith.addf %16, %17 : vector<128x1xf32>
    %19 = tpu.reciprocal %18 : vector<128x1xf32> -> vector<128x1xf32>
    %20 = vector.broadcast %19 : vector<128x1xf32> to vector<128x128xf32>
    %21 = arith.mulf %12, %20 : vector<128x128xf32>
    %cst_11 = arith.constant dense<0.000000e+00> : vector<8x128xf32>
    %22 = tpu.matmul %11, %21, %cst_11 {dimension_numbers = #tpu.dot_dimension_numbers<[1], [0], [0], [1], [0, 0, 1, 1], [], []>} : vector<8x128xf32>, vector<128x128xf32>, vector<8x128xf32> -> vector<8x128xf32>
    %23 = vector.broadcast %2 : vector<1x128xf32> to vector<8x128xf32>
    %24 = arith.addf %22, %23 : vector<8x128xf32>
    %c0_12 = arith.constant 0 : index
    %c0_13 = arith.constant 0 : index
    %25 = vector.load %arg4[%c0_12, %c0_13] : memref<8x256xf32, #tpu.memory_space<vmem>>, vector<8x128xf32>
    tpu.vector_store %arg4[%c0_12, %c0_13], %11 {strides = array<i32>} : memref<8x256xf32, #tpu.memory_space<vmem>>, vector<8x128xf32>,
    %c0_14 = arith.constant 0 : index
    %c128 = arith.constant 128 : index
    %26 = vector.load %arg4[%c0_14, %c128] : memref<8x256xf32, #tpu.memory_space<vmem>>, vector<8x128xf32>
    tpu.vector_store %arg4[%c0_14, %c128], %24 {strides = array<i32>} : memref<8x256xf32, #tpu.memory_space<vmem>>, vector<8x128xf32>,
    return
  }
}

</mosaic_0001>

<llo_original>
// kernel: autoencoder_forward.1
$region0: #{autoencoder_forward.1}
  #allocation0 [shape = 'u32[]', space=smem, size = 0x4, offset = 0x4, fixed_abs, tag = 'smem constant byte address 0x4 - core index']
  #allocation1 [shape = 'u32[144,128]{1,0:T(1,128)}', space=vmem, size = 0x12000, scoped, tag = 'internal scratch']
  %s0 = inlined_call_operand.vmem [shape: f32[8,32], index: 0, kind: input, shape index: {}]
  %s1 = inlined_call_operand.vmem [shape: f32[32,128], index: 1, kind: input, shape index: {}]
  %s2 = inlined_call_operand.vmem [shape: f32[128,128], index: 2, kind: input, shape index: {}]
  %s3 = inlined_call_operand.vmem [shape: f32[2,128], index: 3, kind: input, shape index: {}]
  %s4 = inlined_call_operand.vmem [shape: f32[8,256], index: 4, kind: output, shape index: {}]
  %s5 = sld [smem:[#allocation0]]
  $region26: #{autoencoder_forward.1} parent=0
    _
  %s7 = ssub.s32 1, %s5
  %s8 = scalar_select 0, %s7, %s5
  // Predicated region
  $region2: #{autoencoder_forward.1} parent=0 // pred_check
    _
  $region3: #{autoencoder_forward.1} parent=0 // pred_check_branch
    %10 = sbr.rel (0) target = $region5
  $region4: #{autoencoder_forward.1} parent=0 // pred_region
    _
  $region5: #{autoencoder_forward.1} parent=0 // pred_fallthru
    _
  // Predicated region
  $region6: #{autoencoder_forward.1} parent=0 // pred_check
    _
  $region7: #{autoencoder_forward.1} parent=0 // pred_check_branch
    %12 = sbr.rel (0) target = $region9
  $region8: #{autoencoder_forward.1} parent=0 // pred_region
    _
  $region9: #{autoencoder_forward.1} parent=0 // pred_fallthru
    _
  // Predicated region
  $region10: #{autoencoder_forward.1} parent=0 // pred_check
    _
  $region11: #{autoencoder_forward.1} parent=0 // pred_check_branch
    %14 = sbr.rel (0) target = $region13
  $region12: #{autoencoder_forward.1} parent=0 // pred_region
    _
  $region13: #{autoencoder_forward.1} parent=0 // pred_fallthru
    _
  // Predicated region
  $region14: #{autoencoder_forward.1} parent=0 // pred_check
    _
  $region15: #{autoencoder_forward.1} parent=0 // pred_check_branch
    %16 = sbr.rel (0) target = $region17
  $region16: #{autoencoder_forward.1} parent=0 // pred_region
    _
  $region17: #{autoencoder_forward.1} parent=0 // pred_fallthru
    _
  %v17 = vld [vmem:[%s0] sm:$0xff]
  %v18 = vld [vmem:[%s3] sm:$0x1]
  %v19 = vld [vmem:[%s3 + $0x1] sm:$0x1]
  %v20 = vlaneseq
  %v21 = vshrl.u32 %v20, 7
  %v22 = vsub.s32 0, %v21
  %v23 = vrot.slane %v19, %v22
  %v24 = vsub.f32 %v17, %v23
  %v25 = vld [vmem:[%s1] sm:$0xff]
  %v26 = vld [vmem:[%s1 + $0x8] sm:$0xff]
  %v27 = vld [vmem:[%s1 + $0x10] sm:$0xff]
  %v28 = vld [vmem:[%s1 + $0x18] sm:$0xff]
  %v29 = vlaneseq
  %v30 = vshrl.u32 %v29, 7
  %v31 = vsub.s32 0, %v30
  %v32 = vrot.slane %v18, %v31
  %vm33 = vcmask 261120
  %v35 = vsel %vm33, %v24, 0
  %37 = vmatprep.subr.mxu0 0.0
  %38 = vmatpush1.msra.mxu0 %v25
  %39 = vmatprep.subr.mxu0 0.0
  %40 = vmatpush1.msra.mxu0 %v26
  %41 = vmatprep.subr.mxu0 0.0
  %42 = vmatpush1.msra.mxu0 %v27
  %43 = vmatprep.subr.mxu0 0.0
  %44 = vmatpush1.msra.mxu0 %v28
  %45 = vmatprep.subr.mxu0 0.0
  %46 = vmatpush1.msra.mxu0 0.0
  %47 = vmatprep.subr.mxu0 0.0
  %48 = vmatpush1.msra.mxu0 0.0
  %49 = vmatprep.subr.mxu0 0.0
  %50 = vmatpush1.msra.mxu0 0.0
  %51 = vmatprep.subr.mxu0 0.0
  %52 = vmatpush1.msra.mxu0 0.0
  %53 = vmatprep.subr.mxu0 0.0
  %54 = vmatpush1.msra.mxu0 0.0
  %55 = vmatprep.subr.mxu0 0.0
  %56 = vmatpush1.msra.mxu0 0.0
  %57 = vmatprep.subr.mxu0 0.0
  %58 = vmatpush1.msra.mxu0 0.0
  %59 = vmatprep.subr.mxu0 0.0
  %60 = vmatpush1.msra.mxu0 0.0
  %61 = vmatprep.subr.mxu0 0.0
  %62 = vmatpush1.msra.mxu0 0.0
  %63 = vmatprep.subr.mxu0 0.0
  %64 = vmatpush1.msra.mxu0 0.0
  %65 = vmatprep.subr.mxu0 0.0
  %66 = vmatpush1.msra.mxu0 0.0
  %67 = vmatprep.subr.mxu0 0.0
  %68 = vmatpush1.msra.mxu0 0.0
  %69 = vmatprep.subr.mxu0 0.0
  %70 = vmatpush1.msra.mxu0 0.0
  %71 = vmatprep.subr.mxu0 0.0
  %72 = vmatpush1.msra.mxu0 0.0
  %73 = vmatprep.subr.mxu0 0.0
  %74 = vmatpush1.msra.mxu0 0.0
  %75 = vmatprep.subr.mxu0 0.0
  %76 = vmatpush1.msra.mxu0 0.0
  %77 = vmatprep.subr.mxu0 0.0
  %78 = vmatpush1.msra.mxu0 0.0
  %79 = vmatprep.subr.mxu0 0.0
  %80 = vmatpush1.msra.mxu0 0.0
  %81 = vmatprep.subr.mxu0 0.0
  %82 = vmatpush1.msra.mxu0 0.0
  %83 = vmatprep.subr.mxu0 0.0
  %84 = vmatpush1.msra.mxu0 0.0
  %85 = vmatprep.subr.mxu0 0.0
  %86 = vmatpush1.msra.mxu0 0.0
  %87 = vmatprep.subr.mxu0 0.0
  %88 = vmatpush1.msra.mxu0 0.0
  %89 = vmatprep.subr.mxu0 0.0
  %90 = vmatpush1.msra.mxu0 0.0
  %91 = vmatprep.subr.mxu0 0.0
  %92 = vmatpush1.msra.mxu0 0.0
  %93 = vmatprep.subr.mxu0 0.0
  %94 = vmatpush1.msra.mxu0 0.0
  %95 = vmatprep.subr.mxu0 0.0
  %96 = vmatpush1.msra.mxu0 0.0
  %97 = vmatprep.subr.mxu0 0.0
  %98 = vmatpush1.msra.mxu0 0.0
  %99 = vmatprep.subr.mxu0 0.0
  %100 = vmatpush1.msra.mxu0 0.0
  %101 = vmatprep.mubr.f32.mxu0 0.0
  %102 = vmatmul.mubr.f32.gmra.mrb[0].mxu0 %v35
  %v103 = vpop.f32.mrb[0].mxu0
  %v104 = vadd.f32 %v32, %v103
  %v105 = vpop.f32.mrb[0].mxu0
  %106 = vdwg.mxu0
  %v107 = vmax.f32 %v104, 0.0
  %v108 = vld [vmem:[%s2] sm:$0xff]
  %v109 = vld [vmem:[%s2 + $0x8] sm:$0xff]
  %v110 = vld [vmem:[%s2 + $0x10] sm:$0xff]
  %v111 = vld [vmem:[%s2 + $0x18] sm:$0xff]
  %v112 = vld [vmem:[%s2 + $0x20] sm:$0xff]
  %v113 = vld [vmem:[%s2 + $0x28] sm:$0xff]
  %v114 = vld [vmem:[%s2 + $0x30] sm:$0xff]
  %v115 = vld [vmem:[%s2 + $0x38] sm:$0xff]
  %v116 = vld [vmem:[%s2 + $0x40] sm:$0xff]
  %v117 = vld [vmem:[%s2 + $0x48] sm:$0xff]
  %v118 = vld [vmem:[%s2 + $0x50] sm:$0xff]
  %v119 = vld [vmem:[%s2 + $0x58] sm:$0xff]
  %v120 = vld [vmem:[%s2 + $0x60] sm:$0xff]
  %v121 = vld [vmem:[%s2 + $0x68] sm:$0xff]
  %v122 = vld [vmem:[%s2 + $0x70] sm:$0xff]
  %v123 = vld [vmem:[%s2 + $0x78] sm:$0xff]
  %v124 = vmul.f32 %v108, %v108
  %v125 = vmul.f32 %v109, %v109
  %v126 = vmul.f32 %v110, %v110
  %v127 = vmul.f32 %v111, %v111
  %v128 = vmul.f32 %v112, %v112
  %v129 = vmul.f32 %v113, %v113
  %v130 = vmul.f32 %v114, %v114
  %v131 = vmul.f32 %v115, %v115
  %v132 = vmul.f32 %v116, %v116
  %v133 = vmul.f32 %v117, %v117
  %v134 = vmul.f32 %v118, %v118
  %v135 = vmul.f32 %v119, %v119
  %v136 = vmul.f32 %v120, %v120
  %v137 = vmul.f32 %v121, %v121
  %v138 = vmul.f32 %v122, %v122
  %v139 = vmul.f32 %v123, %v123
  %140 = vadd.xlane.f32.xlu0 %v124
  %v141 = vpop.xlane.xlu0 %140
  %142 = vadd.xlane.f32.xlu0 %v125
  %v143 = vpop.xlane.xlu0 %142
  %144 = vadd.xlane.f32.xlu0 %v126
  %v145 = vpop.xlane.xlu0 %144
  %146 = vadd.xlane.f32.xlu0 %v127
  %v147 = vpop.xlane.xlu0 %146
  %148 = vadd.xlane.f32.xlu0 %v128
  %v149 = vpop.xlane.xlu0 %148
  %150 = vadd.xlane.f32.xlu0 %v129
  %v151 = vpop.xlane.xlu0 %150
  %152 = vadd.xlane.f32.xlu0 %v130
  %v153 = vpop.xlane.xlu0 %152
  %154 = vadd.xlane.f32.xlu0 %v131
  %v155 = vpop.xlane.xlu0 %154
  %156 = vadd.xlane.f32.xlu0 %v132
  %v157 = vpop.xlane.xlu0 %156
  %158 = vadd.xlane.f32.xlu0 %v133
  %v159 = vpop.xlane.xlu0 %158
  %160 = vadd.xlane.f32.xlu0 %v134
  %v161 = vpop.xlane.xlu0 %160
  %162 = vadd.xlane.f32.xlu0 %v135
  %v163 = vpop.xlane.xlu0 %162
  %164 = vadd.xlane.f32.xlu0 %v136
  %v165 = vpop.xlane.xlu0 %164
  %166 = vadd.xlane.f32.xlu0 %v137
  %v167 = vpop.xlane.xlu0 %166
  %168 = vadd.xlane.f32.xlu0 %v138
  %v169 = vpop.xlane.xlu0 %168
  %170 = vadd.xlane.f32.xlu0 %v139
  %v171 = vpop.xlane.xlu0 %170
  %v172 = vrsqrt.pop %v141
  %v173 = vmul.f32 %v141, %v172
  %vm174 = vcmp.eq.f32.partialorder %v141, inf
  %v175 = vsel %vm174, %v141, %v173
  %vm176 = vcmp.eq.f32.partialorder %v141, 0.0
  %v177 = vand.u32 %v141, 2147483648
  %v178 = vsel %vm176, %v177, %v175
  %v179 = vrsqrt.pop %v143
  %v180 = vmul.f32 %v143, %v179
  %vm181 = vcmp.eq.f32.partialorder %v143, inf
  %v182 = vsel %vm181, %v143, %v180
  %vm183 = vcmp.eq.f32.partialorder %v143, 0.0
  %v184 = vand.u32 %v143, 2147483648
  %v185 = vsel %vm183, %v184, %v182
  %v186 = vrsqrt.pop %v145
  %v187 = vmul.f32 %v145, %v186
  %vm188 = vcmp.eq.f32.partialorder %v145, inf
  %v189 = vsel %vm188, %v145, %v187
  %vm190 = vcmp.eq.f32.partialorder %v145, 0.0
  %v191 = vand.u32 %v145, 2147483648
  %v192 = vsel %vm190, %v191, %v189
  %v193 = vrsqrt.pop %v147
  %v194 = vmul.f32 %v147, %v193
  %vm195 = vcmp.eq.f32.partialorder %v147, inf
  %v196 = vsel %vm195, %v147, %v194
  %vm197 = vcmp.eq.f32.partialorder %v147, 0.0
  %v198 = vand.u32 %v147, 2147483648
  %v199 = vsel %vm197, %v198, %v196
  %v200 = vrsqrt.pop %v149
  %v201 = vmul.f32 %v149, %v200
  %vm202 = vcmp.eq.f32.partialorder %v149, inf
  %v203 = vsel %vm202, %v149, %v201
  %vm204 = vcmp.eq.f32.partialorder %v149, 0.0
  %v205 = vand.u32 %v149, 2147483648
  %v206 = vsel %vm204, %v205, %v203
  %v207 = vrsqrt.pop %v151
  %v208 = vmul.f32 %v151, %v207
  %vm209 = vcmp.eq.f32.partialorder %v151, inf
  %v210 = vsel %vm209, %v151, %v208
  %vm211 = vcmp.eq.f32.partialorder %v151, 0.0
  %v212 = vand.u32 %v151, 2147483648
  %v213 = vsel %vm211, %v212, %v210
  %v214 = vrsqrt.pop %v153
  %v215 = vmul.f32 %v153, %v214
  %vm216 = vcmp.eq.f32.partialorder %v153, inf
  %v217 = vsel %vm216, %v153, %v215
  %vm218 = vcmp.eq.f32.partialorder %v153, 0.0
  %v219 = vand.u32 %v153, 2147483648
  %v220 = vsel %vm218, %v219, %v217
  %v221 = vrsqrt.pop %v155
  %v222 = vmul.f32 %v155, %v221
  %vm223 = vcmp.eq.f32.partialorder %v155, inf
  %v224 = vsel %vm223, %v155, %v222
  %vm225 = vcmp.eq.f32.partialorder %v155, 0.0
  %v226 = vand.u32 %v155, 2147483648
  %v227 = vsel %vm225, %v226, %v224
  %v228 = vrsqrt.pop %v157
  %v229 = vmul.f32 %v157, %v228
  %vm230 = vcmp.eq.f32.partialorder %v157, inf
  %v231 = vsel %vm230, %v157, %v229
  %vm232 = vcmp.eq.f32.partialorder %v157, 0.0
  %v233 = vand.u32 %v157, 2147483648
  %v234 = vsel %vm232, %v233, %v231
  %v235 = vrsqrt.pop %v159
  %v236 = vmul.f32 %v159, %v235
  %vm237 = vcmp.eq.f32.partialorder %v159, inf
  %v238 = vsel %vm237, %v159, %v236
  %vm239 = vcmp.eq.f32.partialorder %v159, 0.0
  %v240 = vand.u32 %v159, 2147483648
  %v241 = vsel %vm239, %v240, %v238
  %v242 = vrsqrt.pop %v161
  %v243 = vmul.f32 %v161, %v242
  %vm244 = vcmp.eq.f32.partialorder %v161, inf
  %v245 = vsel %vm244, %v161, %v243
  %vm246 = vcmp.eq.f32.partialorder %v161, 0.0
  %v247 = vand.u32 %v161, 2147483648
  %v248 = vsel %vm246, %v247, %v245
  %v249 = vrsqrt.pop %v163
  %v250 = vmul.f32 %v163, %v249
  %vm251 = vcmp.eq.f32.partialorder %v163, inf
  %v252 = vsel %vm251, %v163, %v250
  %vm253 = vcmp.eq.f32.partialorder %v163, 0.0
  %v254 = vand.u32 %v163, 2147483648
  %v255 = vsel %vm253, %v254, %v252
  %v256 = vrsqrt.pop %v165
  %v257 = vmul.f32 %v165, %v256
  %vm258 = vcmp.eq.f32.partialorder %v165, inf
  %v259 = vsel %vm258, %v165, %v257
  %vm260 = vcmp.eq.f32.partialorder %v165, 0.0
  %v261 = vand.u32 %v165, 2147483648
  %v262 = vsel %vm260, %v261, %v259
  %v263 = vrsqrt.pop %v167
  %v264 = vmul.f32 %v167, %v263
  %vm265 = vcmp.eq.f32.partialorder %v167, inf
  %v266 = vsel %vm265, %v167, %v264
  %vm267 = vcmp.eq.f32.partialorder %v167, 0.0
  %v268 = vand.u32 %v167, 2147483648
  %v269 = vsel %vm267, %v268, %v266
  %v270 = vrsqrt.pop %v169
  %v271 = vmul.f32 %v169, %v270
  %vm272 = vcmp.eq.f32.partialorder %v169, inf
  %v273 = vsel %vm272, %v169, %v271
  %vm274 = vcmp.eq.f32.partialorder %v169, 0.0
  %v275 = vand.u32 %v169, 2147483648
  %v276 = vsel %vm274, %v275, %v273
  %v277 = vrsqrt.pop %v171
  %v278 = vmul.f32 %v171, %v277
  %vm279 = vcmp.eq.f32.partialorder %v171, inf
  %v280 = vsel %vm279, %v171, %v278
  %vm281 = vcmp.eq.f32.partialorder %v171, 0.0
  %v282 = vand.u32 %v171, 2147483648
  %v283 = vsel %vm281, %v282, %v280
  %v284 = vadd.f32 %v178, 1e-08
  %v285 = vadd.f32 %v185, 1e-08
  %v286 = vadd.f32 %v192, 1e-08
  %v287 = vadd.f32 %v199, 1e-08
  %v288 = vadd.f32 %v206, 1e-08
  %v289 = vadd.f32 %v213, 1e-08
  %v290 = vadd.f32 %v220, 1e-08
  %v291 = vadd.f32 %v227, 1e-08
  %v292 = vadd.f32 %v234, 1e-08
  %v293 = vadd.f32 %v241, 1e-08
  %v294 = vadd.f32 %v248, 1e-08
  %v295 = vadd.f32 %v255, 1e-08
  %v296 = vadd.f32 %v262, 1e-08
  %v297 = vadd.f32 %v269, 1e-08
  %v298 = vadd.f32 %v276, 1e-08
  %v299 = vadd.f32 %v283, 1e-08
  %v300 = vrcp.pop %v284
  %v301 = vrcp.pop %v285
  %v302 = vrcp.pop %v286
  %v303 = vrcp.pop %v287
  %v304 = vrcp.pop %v288
  %v305 = vrcp.pop %v289
  %v306 = vrcp.pop %v290
  %v307 = vrcp.pop %v291
  %v308 = vrcp.pop %v292
  %v309 = vrcp.pop %v293
  %v310 = vrcp.pop %v294
  %v311 = vrcp.pop %v295
  %v312 = vrcp.pop %v296
  %v313 = vrcp.pop %v297
  %v314 = vrcp.pop %v298
  %v315 = vrcp.pop %v299
  %v316 = vmul.f32 %v108, %v300
  %v317 = vmul.f32 %v109, %v301
  %v318 = vmul.f32 %v110, %v302
  %v319 = vmul.f32 %v111, %v303
  %v320 = vmul.f32 %v112, %v304
  %v321 = vmul.f32 %v113, %v305
  %v322 = vmul.f32 %v114, %v306
  %v323 = vmul.f32 %v115, %v307
  %v324 = vmul.f32 %v116, %v308
  %v325 = vmul.f32 %v117, %v309
  %v326 = vmul.f32 %v118, %v310
  %v327 = vmul.f32 %v119, %v311
  %v328 = vmul.f32 %v120, %v312
  %v329 = vmul.f32 %v121, %v313
  %v330 = vmul.f32 %v122, %v314
  %v331 = vmul.f32 %v123, %v315
  %332 = vmatprep.subr.mxu0 0.0
  %333 = vmatpush1.msra.mxu0 %v316
  %334 = vmatprep.subr.mxu0 0.0
  %335 = vmatpush1.msra.mxu0 %v317
  %336 = vmatprep.subr.mxu0 0.0
  %337 = vmatpush1.msra.mxu0 %v318
  %338 = vmatprep.subr.mxu0 0.0
  %339 = vmatpush1.msra.mxu0 %v319
  %340 = vmatprep.subr.mxu0 0.0
  %341 = vmatpush1.msra.mxu0 %v320
  %342 = vmatprep.subr.mxu0 0.0
  %343 = vmatpush1.msra.mxu0 %v321
  %344 = vmatprep.subr.mxu0 0.0
  %345 = vmatpush1.msra.mxu0 %v322
  %346 = vmatprep.subr.mxu0 0.0
  %347 = vmatpush1.msra.mxu0 %v323
  %348 = vmatprep.subr.mxu0 0.0
  %349 = vmatpush1.msra.mxu0 %v324
  %350 = vmatprep.subr.mxu0 0.0
  %351 = vmatpush1.msra.mxu0 %v325
  %352 = vmatprep.subr.mxu0 0.0
  %353 = vmatpush1.msra.mxu0 %v326
  %354 = vmatprep.subr.mxu0 0.0
  %355 = vmatpush1.msra.mxu0 %v327
  %356 = vmatprep.subr.mxu0 0.0
  %357 = vmatpush1.msra.mxu0 %v328
  %358 = vmatprep.subr.mxu0 0.0
  %359 = vmatpush1.msra.mxu0 %v329
  %360 = vmatprep.subr.mxu0 0.0
  %361 = vmatpush1.msra.mxu0 %v330
  %362 = vmatprep.subr.mxu0 0.0
  %363 = vmatpush1.msra.mxu0 %v331
  %364 = vmatprep.subr.mxu0 0.0
  %365 = vmatpush1.msra.mxu0 0.0
  %366 = vmatprep.subr.mxu0 0.0
  %367 = vmatpush1.msra.mxu0 0.0
  %368 = vmatprep.subr.mxu0 0.0
  %369 = vmatpush1.msra.mxu0 0.0
  %370 = vmatprep.subr.mxu0 0.0
  %371 = vmatpush1.msra.mxu0 0.0
  %372 = vmatprep.subr.mxu0 0.0
  %373 = vmatpush1.msra.mxu0 0.0
  %374 = vmatprep.subr.mxu0 0.0
  %375 = vmatpush1.msra.mxu0 0.0
  %376 = vmatprep.subr.mxu0 0.0
  %377 = vmatpush1.msra.mxu0 0.0
  %378 = vmatprep.subr.mxu0 0.0
  %379 = vmatpush1.msra.mxu0 0.0
  %380 = vmatprep.subr.mxu0 0.0
  %381 = vmatpush1.msra.mxu0 0.0
  %382 = vmatprep.subr.mxu0 0.0
  %383 = vmatpush1.msra.mxu0 0.0
  %384 = vmatprep.subr.mxu0 0.0
  %385 = vmatpush1.msra.mxu0 0.0
  %386 = vmatprep.subr.mxu0 0.0
  %387 = vmatpush1.msra.mxu0 0.0
  %388 = vmatprep.subr.mxu0 0.0
  %389 = vmatpush1.msra.mxu0 0.0
  %390 = vmatprep.subr.mxu0 0.0
  %391 = vmatpush1.msra.mxu0 0.0
  %392 = vmatprep.subr.mxu0 0.0
  %393 = vmatpush1.msra.mxu0 0.0
  %394 = vmatprep.subr.mxu0 0.0
  %395 = vmatpush1.msra.mxu0 0.0
  %396 = vmatprep.mubr.f32.mxu0 0.0
  %397 = vmatmul.mubr.f32.gmra.mrb[0].mxu0 %v107
  %v398 = vpop.f32.mrb[0].mxu0
  %v399 = vadd.f32 %v23, %v398
  %v400 = vpop.f32.mrb[0].mxu0
  %401 = vdwg.mxu0
  %402 = vst [vmem:[%s4] sm:$0xff] %v107
  %403 = vst [vmem:[%s4 + $0x8] sm:$0xff] %v399
  // Predicated region
  $region18: #{autoencoder_forward.1} parent=0 // pred_check
    _
  $region19: #{autoencoder_forward.1} parent=0 // pred_check_branch
    %405 = sbr.rel (0) target = $region21
  $region20: #{autoencoder_forward.1} parent=0 // pred_region
    _
  $region21: #{autoencoder_forward.1} parent=0 // pred_fallthru
    _
  // Predicated region
  $region22: #{autoencoder_forward.1} parent=0 // pred_check
    _
  $region23: #{autoencoder_forward.1} parent=0 // pred_check_branch
    %407 = sbr.rel (0) target = $region25
  $region24: #{autoencoder_forward.1} parent=0 // pred_region
    _
  $region25: #{autoencoder_forward.1} parent=0 // pred_fallthru
    _

</llo_original>
